<compile_context>
chip_gen: v5e
topology: v5e:2x2
jax: 0.10.0
libtpu: 0.0.40
codegen_flags: <defaults>
</compile_context>

<pallas_src>
import functools

import jax
import jax.numpy as jnp
from jax.experimental import pallas as pl
from jax.experimental.pallas import tpu as pltpu


def _round_up(v, m):
    return (v + m - 1) // m * m


def _uniform_bits31(shape, seed_u32, row_off_u32, layer_idx):
    """Counter-based per-element hash -> uniform bits in [0, 2^31) as int32.

    Stateless: depends only on (seed, layer, global row, column), so the random
    stream does not change with batch tiling or padding, and it needs no
    TPU-only PRNG primitives.
    """
    rows = jax.lax.broadcasted_iota(jnp.int32, shape, 0).astype(jnp.uint32) + row_off_u32
    cols = jax.lax.broadcasted_iota(jnp.int32, shape, 1).astype(jnp.uint32)
    x = rows * jnp.uint32(0x9E3779B1)
    x = x ^ (cols * jnp.uint32(0x85EBCA6B))
    x = x + seed_u32 + jnp.uint32((layer_idx * 0x27D4EB2F + 0x165667B1) & 0xFFFFFFFF)
    # murmur/xxhash-style finalizer
    x = x ^ (x >> 16)
    x = x * jnp.uint32(0x7FEB352D)
    x = x ^ (x >> 15)
    x = x * jnp.uint32(0x846CA68B)
    x = x ^ (x >> 16)
    return (x >> 1).astype(jnp.int32)  # top bit cleared -> signed-safe compare


def _mlp_mcdo_kernel(seed_ref, x_ref, *rest, num_hidden, drop_threshold31,
                     use_dropout, tile_b):
    """Fused MLP forward for one batch tile.

    rest = (w1, b1, ..., wL, bL, w_out, b_out, o_ref)
    Weights are bf16 (MXU-native); biases, accumulators and elementwise math
    are f32.  The 1/(1-p) inverted-dropout scale is pre-folded into the
    downstream weights, so dropout here is a single compare + select.
    """
    param_refs = rest[:-1]
    o_ref = rest[-1]

    seed_u = seed_ref[0].astype(jnp.uint32)
    row_off = (pl.program_id(0) * tile_b).astype(jnp.uint32)
    thr = jnp.int32(drop_threshold31)

    h = x_ref[...]                                       # (tile_b, in_pad) bf16
    for i in range(num_hidden):
        w = param_refs[2 * i][...]                       # (prev_pad, hid_pad) bf16
        b = param_refs[2 * i + 1][...]                   # (1, hid_pad) f32
        acc = jnp.dot(h.astype(w.dtype), w, preferred_element_type=jnp.float32)
        a = jnp.maximum(acc + b, 0.0)                    # bias + ReLU in f32
        if use_dropout:
            bits = _uniform_bits31(a.shape, seed_u, row_off, i)
            a = jnp.where(bits >= thr, a, 0.0)           # keep prob = 1 - p
        h = a

    w_out = param_refs[2 * num_hidden][...]
    b_out = param_refs[2 * num_hidden + 1][...]
    out = jnp.dot(h.astype(w_out.dtype), w_out,
                  preferred_element_type=jnp.float32) + b_out
    o_ref[...] = out.astype(o_ref.dtype)


def feedforward_nn_mcdo(x, params, *, seq_len, num_features, dropout_p,
                        seed=0, training=True):
    """Forward pass of FeedForwardNN_MCDO.

    x:      (B, seq_len, num_features) float32
    params: list of (W, b); W: (in, out) float32 (transposed vs. torch's
            nn.Linear), b: (1, out) or (out,) float32.  Last entry is the
            output layer (no ReLU / dropout).
    """
    B = x.shape[0]
    in_dim = seq_len * num_features
    num_hidden = len(params) - 1
    out_dim = params[-1][0].shape[1]
    dropout_p = float(dropout_p)
    use_dropout = bool(training) and dropout_p > 0.0

    # ---- tile / padding choices (lane-dense widths, MXU-sized M) -----------
    tile_b = 256 if B >= 256 else 128
    B_pad = _round_up(B, tile_b)
    in_pad = _round_up(in_dim, 128)
    out_pad = _round_up(out_dim, 128)

    # ---- flatten + pad input; cast the matmul operand to bf16 --------------
    x_flat = x.reshape((B, in_dim)).astype(jnp.float32)
    x_flat = jnp.pad(x_flat, ((0, B_pad - B), (0, in_pad - in_dim)))
    x_flat = x_flat.astype(jnp.bfloat16)

    # ---- params: fold 1/(1-p) into downstream weights, pad to 128, bf16 ----
    inv_keep = 1.0 / (1.0 - dropout_p) if use_dropout else 1.0
    flat_params = []
    prev_pad = in_pad
    for li, (w, b) in enumerate(params):
        w = w.astype(jnp.float32)
        b = b.reshape(1, -1).astype(jnp.float32)
        if li > 0:
            w = w * inv_keep          # consumes dropout(ReLU(prev layer))
        fan_in, fan_out = w.shape
        fo_pad = _round_up(fan_out, 128)
        w = jnp.pad(w, ((0, prev_pad - fan_in), (0, fo_pad - fan_out)))
        b = jnp.pad(b, ((0, 0), (0, fo_pad - fan_out)))
        flat_params.append(w.astype(jnp.bfloat16))
        flat_params.append(b)
        prev_pad = fo_pad

    # ---- VMEM budget: resident weights + double-buffered x/out tiles -------
    # TODO(synk): if the first-layer weight alone approaches this budget (very
    # long sequences), add a K-reduction grid axis / emit_pipeline for layer 1.
    max_pad = max(in_pad, out_pad, *[p.shape[-1] for p in flat_params[::2]])
    weight_bytes = sum(int(p.size) * p.dtype.itemsize for p in flat_params)
    io_bytes = 2 * (tile_b * in_pad * 2 + tile_b * out_pad * 4)
    act_bytes = 4 * tile_b * max_pad * 4
    vmem_limit = int(min(max(1.5 * (weight_bytes + io_bytes + act_bytes),
                             16 * 1024 * 1024),
                         48 * 1024 * 1024))   # stay under v7x's 64 MiB VMEM

    drop_threshold31 = min(int(round(dropout_p * 2.0 ** 31)), 2 ** 31 - 1)

    kernel = functools.partial(
        _mlp_mcdo_kernel,
        num_hidden=num_hidden,
        drop_threshold31=drop_threshold31,
        use_dropout=use_dropout,
        tile_b=tile_b,
    )

    seed_arr = jnp.array([seed], dtype=jnp.int32)

    in_specs = [pl.BlockSpec((tile_b, in_pad), lambda i, s: (i, 0))]
    for p in flat_params:
        # Grid-invariant index_map -> weights/biases stay resident in VMEM.
        in_specs.append(pl.BlockSpec(p.shape, lambda i, s: (0, 0)))
    out_specs = pl.BlockSpec((tile_b, out_pad), lambda i, s: (i, 0))

    grid_spec = pltpu.PrefetchScalarGridSpec(
        num_scalar_prefetch=1,
        grid=(B_pad // tile_b,),
        in_specs=in_specs,
        out_specs=out_specs,
    )

    out = pl.pallas_call(
        kernel,
        out_shape=jax.ShapeDtypeStruct((B_pad, out_pad), jnp.float32),
        grid_spec=grid_spec,
        compiler_params=pltpu.CompilerParams(
            dimension_semantics=("parallel",),   # batch tiles across TCs on v7x
            vmem_limit_bytes=vmem_limit,
        ),
    )(seed_arr, x_flat, *flat_params)

    return out[:B, :out_dim]


def init_params(key, num_features, seq_len, hidden_sizes, output_size):
    """Deterministic init mimicking torch.nn.Linear default U[-1/sqrt(fan_in), +]."""
    if not isinstance(hidden_sizes, list):
        hidden_sizes = [hidden_sizes]
    sizes = [num_features * seq_len] + hidden_sizes + [output_size]
    params = []
    for i in range(len(sizes) - 1):
        fan_in, fan_out = sizes[i], sizes[i + 1]
        key, kw, kb = jax.random.split(key, 3)
        bound = 1.0 / jnp.sqrt(jnp.float32(fan_in))
        w = jax.random.uniform(kw, (fan_in, fan_out), jnp.float32, -bound, bound)
        b = jax.random.uniform(kb, (1, fan_out), jnp.float32, -bound, bound)
        params.append((w, b))
    return params


def _reference_eval(x, params, seq_len, num_features):
    """Pure-JAX eval-mode (dropout off) reference."""
    h = x.reshape((x.shape[0], seq_len * num_features)).astype(jnp.float32)
    for w, b in params[:-1]:
        h = jnp.maximum(h @ w + b.reshape(1, -1), 0.0)
    w, b = params[-1]
    return h @ w + b.reshape(1, -1)


if __name__ == "__main__":
    batch = 2
    num_features = 4
    seq_len = 8
    hidden_sizes = [32, 32]
    output_size = 4
    dropout_prob = 0.1

    key = jax.random.PRNGKey(0)
    key, kx = jax.random.split(key)
    x = jax.random.normal(kx, (batch, seq_len, num_features), dtype=jnp.float32)
    params = init_params(key, num_features, seq_len, hidden_sizes, output_size)

    # Eval mode (dropout off): numerically check against a pure-JAX reference.
    y_eval = feedforward_nn_mcdo(
        x, params, seq_len=seq_len, num_features=num_features,
        dropout_p=dropout_prob, seed=0, training=False)
    y_eval = jax.block_until_ready(y_eval)
    y_ref = _reference_eval(x, params, seq_len, num_features)
    assert y_eval.shape == (batch, output_size), y_eval.shape
    assert jnp.allclose(y_eval, y_ref, atol=5e-2, rtol=5e-2), \
        float(jnp.max(jnp.abs(y_eval - y_ref)))

    # Training mode: one Monte-Carlo dropout sample.
    y_mc = feedforward_nn_mcdo(
        x, params, seq_len=seq_len, num_features=num_features,
        dropout_p=dropout_prob, seed=1234, training=True)
    y_mc = jax.block_until_ready(y_mc)
    assert y_mc.shape == (batch, output_size), y_mc.shape
    assert bool(jnp.all(jnp.isfinite(y_mc)))

    print("KERNEL_OK")
</pallas_src>

<mosaic_0001>
module attributes {stable_mosaic.version = 11 : i64} {
  func.func @_mlp_mcdo_kernel(%arg0: i32, %arg1: memref<1xi32, #tpu.memory_space<smem>>, %arg2: memref<128x128xbf16, #tpu.memory_space<vmem>>, %arg3: memref<128x128xbf16, #tpu.memory_space<vmem>>, %arg4: memref<1x128xf32, #tpu.memory_space<vmem>>, %arg5: memref<128x128xbf16, #tpu.memory_space<vmem>>, %arg6: memref<1x128xf32, #tpu.memory_space<vmem>>, %arg7: memref<128x128xbf16, #tpu.memory_space<vmem>>, %arg8: memref<1x128xf32, #tpu.memory_space<vmem>>, %arg9: memref<128x128xf32, #tpu.memory_space<vmem>>) attributes {dimension_semantics = [#tpu.dimension_semantics<parallel>], iteration_bounds = array<i64: 1>, scalar_prefetch = 1 : i64, scratch_operands = 0 : i64, tpu.core_type = #tpu.core_type<tc>, window_params = [{transform_indices = @transform_0, window_bounds = array<i64: 128, 128>}, {pipeline_mode = #tpu.pipeline_mode<synchronous>, transform_indices = @transform_1, window_bounds = array<i64: 128, 128>}, {pipeline_mode = #tpu.pipeline_mode<synchronous>, transform_indices = @transform_2, window_bounds = array<i64: 1, 128>}, {pipeline_mode = #tpu.pipeline_mode<synchronous>, transform_indices = @transform_3, window_bounds = array<i64: 128, 128>}, {pipeline_mode = #tpu.pipeline_mode<synchronous>, transform_indices = @transform_4, window_bounds = array<i64: 1, 128>}, {pipeline_mode = #tpu.pipeline_mode<synchronous>, transform_indices = @transform_5, window_bounds = array<i64: 128, 128>}, {pipeline_mode = #tpu.pipeline_mode<synchronous>, transform_indices = @transform_6, window_bounds = array<i64: 1, 128>}, {transform_indices = @transform_7, window_bounds = array<i64: 128, 128>}]} {
    %c0 = arith.constant 0 : index
    %c0_0 = arith.constant 0 : index
    %0 = vector.load %arg2[%c0, %c0_0] : memref<128x128xbf16, #tpu.memory_space<vmem>>, vector<128x128xbf16>
    %c0_1 = arith.constant 0 : index
    %c0_2 = arith.constant 0 : index
    %1 = vector.load %arg3[%c0_1, %c0_2] : memref<128x128xbf16, #tpu.memory_space<vmem>>, vector<128x128xbf16>
    %c0_3 = arith.constant 0 : index
    %c0_4 = arith.constant 0 : index
    %2 = vector.load %arg4[%c0_3, %c0_4] : memref<1x128xf32, #tpu.memory_space<vmem>>, vector<1x128xf32>
    %cst = arith.constant dense<0.000000e+00> : vector<128x128xf32>
    %3 = tpu.matmul %0, %1, %cst {dimension_numbers = #tpu.dot_dimension_numbers<[1], [0], [0], [1], [0, 0, 1, 1], [], []>} : vector<128x128xbf16>, vector<128x128xbf16>, vector<128x128xf32> -> vector<128x128xf32>
    %4 = vector.broadcast %2 : vector<1x128xf32> to vector<128x128xf32>
    %5 = arith.addf %3, %4 : vector<128x128xf32>
    %cst_5 = arith.constant 0.000000e+00 : f32
    %6 = vector.broadcast %cst_5 : f32 to vector<128x128xf32>
    %7 = arith.maximumf %5, %6 : vector<128x128xf32>
    %c0_6 = arith.constant 0 : index
    %c0_7 = arith.constant 0 : index
    %8 = vector.load %arg5[%c0_6, %c0_7] : memref<128x128xbf16, #tpu.memory_space<vmem>>, vector<128x128xbf16>
    %c0_8 = arith.constant 0 : index
    %c0_9 = arith.constant 0 : index
    %9 = vector.load %arg6[%c0_8, %c0_9] : memref<1x128xf32, #tpu.memory_space<vmem>>, vector<1x128xf32>
    %10 = arith.truncf %7 : vector<128x128xf32> to vector<128x128xbf16>
    %cst_10 = arith.constant dense<0.000000e+00> : vector<128x128xf32>
    %11 = tpu.matmul %10, %8, %cst_10 {dimension_numbers = #tpu.dot_dimension_numbers<[1], [0], [0], [1], [0, 0, 1, 1], [], []>} : vector<128x128xbf16>, vector<128x128xbf16>, vector<128x128xf32> -> vector<128x128xf32>
    %12 = vector.broadcast %9 : vector<1x128xf32> to vector<128x128xf32>
    %13 = arith.addf %11, %12 : vector<128x128xf32>
    %cst_11 = arith.constant 0.000000e+00 : f32
    %14 = vector.broadcast %cst_11 : f32 to vector<128x128xf32>
    %15 = arith.maximumf %13, %14 : vector<128x128xf32>
    %c0_12 = arith.constant 0 : index
    %c0_13 = arith.constant 0 : index
    %16 = vector.load %arg7[%c0_12, %c0_13] : memref<128x128xbf16, #tpu.memory_space<vmem>>, vector<128x128xbf16>
    %c0_14 = arith.constant 0 : index
    %c0_15 = arith.constant 0 : index
    %17 = vector.load %arg8[%c0_14, %c0_15] : memref<1x128xf32, #tpu.memory_space<vmem>>, vector<1x128xf32>
    %18 = arith.truncf %15 : vector<128x128xf32> to vector<128x128xbf16>
    %cst_16 = arith.constant dense<0.000000e+00> : vector<128x128xf32>
    %19 = tpu.matmul %18, %16, %cst_16 {dimension_numbers = #tpu.dot_dimension_numbers<[1], [0], [0], [1], [0, 0, 1, 1], [], []>} : vector<128x128xbf16>, vector<128x128xbf16>, vector<128x128xf32> -> vector<128x128xf32>
    %20 = vector.broadcast %17 : vector<1x128xf32> to vector<128x128xf32>
    %21 = arith.addf %19, %20 : vector<128x128xf32>
    %c0_17 = arith.constant 0 : index
    %c0_18 = arith.constant 0 : index
    %22 = vector.load %arg9[%c0_17, %c0_18] : memref<128x128xf32, #tpu.memory_space<vmem>>, vector<128x128xf32>
    tpu.vector_store %arg9[%c0_17, %c0_18], %21 {strides = array<i32>} : memref<128x128xf32, #tpu.memory_space<vmem>>, vector<128x128xf32>,
    return
  }
  func.func @transform_0(%arg0: i32, %arg1: memref<1xi32, #tpu.memory_space<smem>>) -> (i32, i32) {
    %c0_i32 = arith.constant 0 : i32
    %c0_i32_0 = arith.constant 0 : i32
    return %arg0, %c0_i32 : i32, i32
  }
  func.func @transform_1(%arg0: i32, %arg1: memref<1xi32, #tpu.memory_space<smem>>) -> (i32, i32) {
    %c0_i32 = arith.constant 0 : i32
    %c0_i32_0 = arith.constant 0 : i32
    %c0_i32_1 = arith.constant 0 : i32
    return %c0_i32, %c0_i32_0 : i32, i32
  }
  func.func @transform_2(%arg0: i32, %arg1: memref<1xi32, #tpu.memory_space<smem>>) -> (i32, i32) {
    %c0_i32 = arith.constant 0 : i32
    %c0_i32_0 = arith.constant 0 : i32
    %c0_i32_1 = arith.constant 0 : i32
    return %c0_i32, %c0_i32_0 : i32, i32
  }
  func.func @transform_3(%arg0: i32, %arg1: memref<1xi32, #tpu.memory_space<smem>>) -> (i32, i32) {
    %c0_i32 = arith.constant 0 : i32
    %c0_i32_0 = arith.constant 0 : i32
    %c0_i32_1 = arith.constant 0 : i32
    return %c0_i32, %c0_i32_0 : i32, i32
  }
  func.func @transform_4(%arg0: i32, %arg1: memref<1xi32, #tpu.memory_space<smem>>) -> (i32, i32) {
    %c0_i32 = arith.constant 0 : i32
    %c0_i32_0 = arith.constant 0 : i32
    %c0_i32_1 = arith.constant 0 : i32
    return %c0_i32, %c0_i32_0 : i32, i32
  }
  func.func @transform_5(%arg0: i32, %arg1: memref<1xi32, #tpu.memory_space<smem>>) -> (i32, i32) {
    %c0_i32 = arith.constant 0 : i32
    %c0_i32_0 = arith.constant 0 : i32
    %c0_i32_1 = arith.constant 0 : i32
    return %c0_i32, %c0_i32_0 : i32, i32
  }
  func.func @transform_6(%arg0: i32, %arg1: memref<1xi32, #tpu.memory_space<smem>>) -> (i32, i32) {
    %c0_i32 = arith.constant 0 : i32
    %c0_i32_0 = arith.constant 0 : i32
    %c0_i32_1 = arith.constant 0 : i32
    return %c0_i32, %c0_i32_0 : i32, i32
  }
  func.func @transform_7(%arg0: i32, %arg1: memref<1xi32, #tpu.memory_space<smem>>) -> (i32, i32) {
    %c0_i32 = arith.constant 0 : i32
    %c0_i32_0 = arith.constant 0 : i32
    return %arg0, %c0_i32 : i32, i32
  }
}

</mosaic_0001>

<llo_original>
// kernel: tpu_custom_call.1
$region0: #{tpu_custom_call.1}
  #allocation0 [shape = 'u32[]', space=smem, size = 0x4, offset = 0x4, fixed_abs, tag = 'smem constant byte address 0x4 - core index']
  #allocation1 [shape = 'u32[72,128]{1,0:T(1,128)}', space=vmem, size = 0x9000, scoped, tag = 'internal scratch']
  #allocation2 [shape = 's32[1]{0}', space=sflag, size = 0x4, scoped, tag = 'scoped memory for tpu_custom_call.1']
  #allocation3 [shape = 's32[1]{0:T(128)S(6)}', space=smem, size = 0x200, scoped, tag = 'prefetched SMEM operand 0']
  %s0 = inlined_call_operand.<no memory space> [shape: s32[1], index: 0, kind: input, shape index: {}]
  %s1 = inlined_call_operand.hbm [shape: bf16[128,128], index: 1, kind: input, shape index: {}]
  %s2 = inlined_call_operand.hbm [shape: bf16[128,128], index: 2, kind: input, shape index: {}]
  %s3 = inlined_call_operand.vmem [shape: f32[1,128], index: 3, kind: input, shape index: {}]
  %s4 = inlined_call_operand.hbm [shape: bf16[128,128], index: 4, kind: input, shape index: {}]
  %s5 = inlined_call_operand.vmem [shape: f32[1,128], index: 5, kind: input, shape index: {}]
  %s6 = inlined_call_operand.hbm [shape: bf16[128,128], index: 6, kind: input, shape index: {}]
  %s7 = inlined_call_operand.vmem [shape: f32[1,128], index: 7, kind: input, shape index: {}]
  %s8 = inlined_call_operand.hbm [shape: f32[128,128], index: 8, kind: output, shape index: {}]
  %s9 = sld [smem:[#allocation0]]
  $region54: #{tpu_custom_call.1} parent=0
    _
  %s11 = ssub.s32 1, %s9
  %s12 = scalar_select 0, %s11, %s9
  %13 = sst [smem:[#allocation3]] %s0
  $region1: #{tpu_custom_call.1} parent=0
    #allocation4 [shape = 'u8[32768]{0}', space=vmem, size = 0x8000, scoped, tag = 'input window, operand 1, single buffered']
    #allocation5 [shape = 's32[1]{0}', space=sflag, size = 0x4, scoped, tag = 'scoped memory for tpu_custom_call.1']
    #allocation6 [shape = 's32[1]{0}', space=sflag, size = 0x4, scoped, tag = 'scoped memory for tpu_custom_call.1']
    #allocation7 [shape = 'u8[32768]{0}', space=vmem, size = 0x8000, scoped, tag = 'input window, operand 2, single buffered']
    #allocation8 [shape = 's32[1]{0}', space=sflag, size = 0x4, scoped, tag = 'scoped memory for tpu_custom_call.1']
    #allocation9 [shape = 'u8[32768]{0}', space=vmem, size = 0x8000, scoped, tag = 'input window, operand 4, single buffered']
    #allocation10 [shape = 'u8[32768]{0}', space=vmem, size = 0x8000, scoped, tag = 'input window, operand 6, single buffered']
    #allocation11 [shape = 's32[1]{0}', space=sflag, size = 0x4, scoped, tag = 'scoped memory for tpu_custom_call.1']
    #allocation12 [shape = 'u8[65536]{0}', space=vmem, size = 0x10000, scoped, tag = 'output window, operand 0, single buffered']
    %14 = vsyncpa [#allocation5], 0
    %15 = vsyncpa [#allocation8], 0
    %16 = vsyncpa [#allocation11], 0
    %17 = vsyncpa [#allocation6], 0
    // Predicated region
    $region2: #{tpu_custom_call.1} parent=1 // pred_check
      _
    $region3: #{tpu_custom_call.1} parent=1 // pred_check_branch
      %19 = sbr.rel (0) target = $region5
    $region4: #{tpu_custom_call.1} parent=1 // pred_region
      %21 = vsyncadd [#allocation5], 0
      %s22 = sshll.u32 %s1, 4
      %s23 = int_to_ptr.hbm [resolvable:$true] %s22
      %s24 = sshll.u32 [#allocation4], 4
      %s25 = int_to_ptr.vmem [resolvable:$true] %s24
      %30 = dma.hbm_to_vmem [thread:$0]  %s23, 1024, %s25, [#allocation5], 64, 64, 4
    $region5: #{tpu_custom_call.1} parent=1 // pred_fallthru
      _
    // Predicated region
    $region6: #{tpu_custom_call.1} parent=1 // pred_check
      _
    $region7: #{tpu_custom_call.1} parent=1 // pred_check_branch
      %32 = sbr.rel (0) target = $region9
    $region8: #{tpu_custom_call.1} parent=1 // pred_region
      %34 = vsyncadd [#allocation8], 0
      %s35 = sshll.u32 %s2, 4
      %s36 = int_to_ptr.hbm [resolvable:$true] %s35
      %s37 = sshll.u32 [#allocation7], 4
      %s38 = int_to_ptr.vmem [resolvable:$true] %s37
      %43 = dma.hbm_to_vmem [thread:$0]  %s36, 1024, %s38, [#allocation8], 64, 64, 4
    $region9: #{tpu_custom_call.1} parent=1 // pred_fallthru
      _
    // Predicated region
    $region10: #{tpu_custom_call.1} parent=1 // pred_check
      _
    $region11: #{tpu_custom_call.1} parent=1 // pred_check_branch
      %45 = sbr.rel (0) target = $region13
    $region12: #{tpu_custom_call.1} parent=1 // pred_region
      _
    $region13: #{tpu_custom_call.1} parent=1 // pred_fallthru
      _
    // Predicated region
    $region14: #{tpu_custom_call.1} parent=1 // pred_check
      _
    $region15: #{tpu_custom_call.1} parent=1 // pred_check_branch
      %47 = sbr.rel (0) target = $region17
    $region16: #{tpu_custom_call.1} parent=1 // pred_region
      %49 = vsyncadd [#allocation8], 0
      %s50 = sshll.u32 %s4, 4
      %s51 = int_to_ptr.hbm [resolvable:$true] %s50
      %s52 = sshll.u32 [#allocation9], 4
      %s53 = int_to_ptr.vmem [resolvable:$true] %s52
      %58 = dma.hbm_to_vmem [thread:$0]  %s51, 1024, %s53, [#allocation8], 64, 64, 4
    $region17: #{tpu_custom_call.1} parent=1 // pred_fallthru
      _
    // Predicated region
    $region18: #{tpu_custom_call.1} parent=1 // pred_check
      _
    $region19: #{tpu_custom_call.1} parent=1 // pred_check_branch
      %60 = sbr.rel (0) target = $region21
    $region20: #{tpu_custom_call.1} parent=1 // pred_region
      _
    $region21: #{tpu_custom_call.1} parent=1 // pred_fallthru
      _
    // Predicated region
    $region22: #{tpu_custom_call.1} parent=1 // pred_check
      _
    $region23: #{tpu_custom_call.1} parent=1 // pred_check_branch
      %62 = sbr.rel (0) target = $region25
    $region24: #{tpu_custom_call.1} parent=1 // pred_region
      %64 = vsyncadd [#allocation11], 0
      %s65 = sshll.u32 %s6, 4
      %s66 = int_to_ptr.hbm [resolvable:$true] %s65
      %s67 = sshll.u32 [#allocation10], 4
      %s68 = int_to_ptr.vmem [resolvable:$true] %s67
      %73 = dma.hbm_to_vmem [thread:$0]  %s66, 1024, %s68, [#allocation11], 64, 64, 4
    $region25: #{tpu_custom_call.1} parent=1 // pred_fallthru
      _
    // Predicated region
    $region26: #{tpu_custom_call.1} parent=1 // pred_check
      _
    $region27: #{tpu_custom_call.1} parent=1 // pred_check_branch
      %75 = sbr.rel (0) target = $region29
    $region28: #{tpu_custom_call.1} parent=1 // pred_region
      _
    $region29: #{tpu_custom_call.1} parent=1 // pred_fallthru
      _
    // Predicated region
    $region30: #{tpu_custom_call.1} parent=1 // pred_check
      _
    $region31: #{tpu_custom_call.1} parent=1 // pred_check_branch
      %77 = sbr.rel (0) target = $region33
    $region32: #{tpu_custom_call.1} parent=1 // pred_region
      %79 = dma.done [#allocation5], 1024
    $region33: #{tpu_custom_call.1} parent=1 // pred_fallthru
      _
    // Predicated region
    $region34: #{tpu_custom_call.1} parent=1 // pred_check
      _
    $region35: #{tpu_custom_call.1} parent=1 // pred_check_branch
      %81 = sbr.rel (0) target = $region37
    $region36: #{tpu_custom_call.1} parent=1 // pred_region
      %83 = dma.done [#allocation8], 1024
    $region37: #{tpu_custom_call.1} parent=1 // pred_fallthru
      _
    // Predicated region
    $region38: #{tpu_custom_call.1} parent=1 // pred_check
      _
    $region39: #{tpu_custom_call.1} parent=1 // pred_check_branch
      %85 = sbr.rel (0) target = $region41
    $region40: #{tpu_custom_call.1} parent=1 // pred_region
      %87 = dma.done [#allocation8], 1024
    $region41: #{tpu_custom_call.1} parent=1 // pred_fallthru
      _
    // Predicated region
    $region42: #{tpu_custom_call.1} parent=1 // pred_check
      _
    $region43: #{tpu_custom_call.1} parent=1 // pred_check_branch
      %89 = sbr.rel (0) target = $region45
    $region44: #{tpu_custom_call.1} parent=1 // pred_region
      %91 = dma.done [#allocation11], 1024
    $region45: #{tpu_custom_call.1} parent=1 // pred_fallthru
      _
    %v92 = vld [vmem:[#allocation4] sm:$0xf]
    %v93 = vld [vmem:[#allocation4 + $0x4] sm:$0xf]
    %v94 = vld [vmem:[#allocation4 + $0x8] sm:$0xf]
    %v95 = vld [vmem:[#allocation4 + $0xc] sm:$0xf]
    %v96 = vld [vmem:[#allocation4 + $0x10] sm:$0xf]
    %v97 = vld [vmem:[#allocation4 + $0x14] sm:$0xf]
    %v98 = vld [vmem:[#allocation4 + $0x18] sm:$0xf]
    %v99 = vld [vmem:[#allocation4 + $0x1c] sm:$0xf]
    %v100 = vld [vmem:[#allocation4 + $0x20] sm:$0xf]
    %v101 = vld [vmem:[#allocation4 + $0x24] sm:$0xf]
    %v102 = vld [vmem:[#allocation4 + $0x28] sm:$0xf]
    %v103 = vld [vmem:[#allocation4 + $0x2c] sm:$0xf]
    %v104 = vld [vmem:[#allocation4 + $0x30] sm:$0xf]
    %v105 = vld [vmem:[#allocation4 + $0x34] sm:$0xf]
    %v106 = vld [vmem:[#allocation4 + $0x38] sm:$0xf]
    %v107 = vld [vmem:[#allocation4 + $0x3c] sm:$0xf]
    %v108 = vld [vmem:[#allocation7] sm:$0xf]
    %v109 = vld [vmem:[#allocation7 + $0x4] sm:$0xf]
    %v110 = vld [vmem:[#allocation7 + $0x8] sm:$0xf]
    %v111 = vld [vmem:[#allocation7 + $0xc] sm:$0xf]
    %v112 = vld [vmem:[#allocation7 + $0x10] sm:$0xf]
    %v113 = vld [vmem:[#allocation7 + $0x14] sm:$0xf]
    %v114 = vld [vmem:[#allocation7 + $0x18] sm:$0xf]
    %v115 = vld [vmem:[#allocation7 + $0x1c] sm:$0xf]
    %v116 = vld [vmem:[#allocation7 + $0x20] sm:$0xf]
    %v117 = vld [vmem:[#allocation7 + $0x24] sm:$0xf]
    %v118 = vld [vmem:[#allocation7 + $0x28] sm:$0xf]
    %v119 = vld [vmem:[#allocation7 + $0x2c] sm:$0xf]
    %v120 = vld [vmem:[#allocation7 + $0x30] sm:$0xf]
    %v121 = vld [vmem:[#allocation7 + $0x34] sm:$0xf]
    %v122 = vld [vmem:[#allocation7 + $0x38] sm:$0xf]
    %v123 = vld [vmem:[#allocation7 + $0x3c] sm:$0xf]
    %v124 = vld [vmem:[%s3] sm:$0x1]
    %v126 = vperm.slane %v124, 0
    %v144 = vunpack.c.l.b16 %v92
    %v145 = vunpack.c.l.b16 %v93
    %v146 = vunpack.c.l.b16 %v94
    %v147 = vunpack.c.l.b16 %v95
    %v148 = vunpack.c.l.b16 %v96
    %v149 = vunpack.c.l.b16 %v97
    %v150 = vunpack.c.l.b16 %v98
    %v151 = vunpack.c.l.b16 %v99
    %v152 = vunpack.c.l.b16 %v100
    %v153 = vunpack.c.l.b16 %v101
    %v154 = vunpack.c.l.b16 %v102
    %v155 = vunpack.c.l.b16 %v103
    %v156 = vunpack.c.l.b16 %v104
    %v157 = vunpack.c.l.b16 %v105
    %v158 = vunpack.c.l.b16 %v106
    %v159 = vunpack.c.l.b16 %v107
    %v160 = vpack.c.b16 %v145, %v144
    %v161 = vpack.c.b16 %v147, %v146
    %v162 = vpack.c.b16 %v149, %v148
    %v163 = vpack.c.b16 %v151, %v150
    %v164 = vpack.c.b16 %v153, %v152
    %v165 = vpack.c.b16 %v155, %v154
    %v166 = vpack.c.b16 %v157, %v156
    %v167 = vpack.c.b16 %v159, %v158
    %v192 = vunpack.c.l.b16 %v108
    %v193 = vunpack.c.l.b16 %v109
    %v194 = vunpack.c.l.b16 %v110
    %v195 = vunpack.c.l.b16 %v111
    %v196 = vunpack.c.l.b16 %v112
    %v197 = vunpack.c.l.b16 %v113
    %v198 = vunpack.c.l.b16 %v114
    %v199 = vunpack.c.l.b16 %v115
    %v200 = vunpack.c.l.b16 %v116
    %v201 = vunpack.c.l.b16 %v117
    %v202 = vunpack.c.l.b16 %v118
    %v203 = vunpack.c.l.b16 %v119
    %v204 = vunpack.c.l.b16 %v120
    %v205 = vunpack.c.l.b16 %v121
    %v206 = vunpack.c.l.b16 %v122
    %v207 = vunpack.c.l.b16 %v123
    %v208 = vpack.c.b16 %v193, %v192
    %v209 = vpack.c.b16 %v195, %v194
    %v210 = vpack.c.b16 %v197, %v196
    %v211 = vpack.c.b16 %v199, %v198
    %v212 = vpack.c.b16 %v201, %v200
    %v213 = vpack.c.b16 %v203, %v202
    %v214 = vpack.c.b16 %v205, %v204
    %v215 = vpack.c.b16 %v207, %v206
    %224 = vmatpush.bf16.msra.mxu0 %v215
    %225 = vmatpush.bf16.msra.mxu0 %v214
    %226 = vmatpush.bf16.msra.mxu0 %v213
    %227 = vmatpush.bf16.msra.mxu0 %v212
    %228 = vmatpush.bf16.msra.mxu0 %v211
    %229 = vmatpush.bf16.msra.mxu0 %v210
    %230 = vmatpush.bf16.msra.mxu0 %v209
    %231 = vmatpush.bf16.msra.mxu0 %v208
    %232 = vmatmul.bf16.gmra.mxu0 %v160
    %v233 = vpop.f32.mrf.mxu0
    %v234 = vadd.f32 %v126, %v233
    %v235 = vpop.f32.mrf.mxu0
    %v236 = vadd.f32 %v126, %v235
    %237 = vmatmul.bf16.gmra.mxu0 %v161
    %v238 = vpop.f32.mrf.mxu0
    %v239 = vadd.f32 %v126, %v238
    %v240 = vpop.f32.mrf.mxu0
    %v241 = vadd.f32 %v126, %v240
    %242 = vmatmul.bf16.gmra.mxu0 %v162
    %v243 = vpop.f32.mrf.mxu0
    %v244 = vadd.f32 %v126, %v243
    %v245 = vpop.f32.mrf.mxu0
    %v246 = vadd.f32 %v126, %v245
    %247 = vmatmul.bf16.gmra.mxu0 %v163
    %v248 = vpop.f32.mrf.mxu0
    %v249 = vadd.f32 %v126, %v248
    %v250 = vpop.f32.mrf.mxu0
    %v251 = vadd.f32 %v126, %v250
    %252 = vmatmul.bf16.gmra.mxu0 %v164
    %v253 = vpop.f32.mrf.mxu0
    %v254 = vadd.f32 %v126, %v253
    %v255 = vpop.f32.mrf.mxu0
    %v256 = vadd.f32 %v126, %v255
    %257 = vmatmul.bf16.gmra.mxu0 %v165
    %v258 = vpop.f32.mrf.mxu0
    %v259 = vadd.f32 %v126, %v258
    %v260 = vpop.f32.mrf.mxu0
    %v261 = vadd.f32 %v126, %v260
    %262 = vmatmul.bf16.gmra.mxu0 %v166
    %v263 = vpop.f32.mrf.mxu0
    %v264 = vadd.f32 %v126, %v263
    %v265 = vpop.f32.mrf.mxu0
    %v266 = vadd.f32 %v126, %v265
    %267 = vmatmul.bf16.gmra.mxu0 %v167
    %v268 = vpop.f32.mrf.mxu0
    %v269 = vadd.f32 %v126, %v268
    %v270 = vpop.f32.mrf.mxu0
    %v271 = vadd.f32 %v126, %v270
    %272 = vdwg.mxu0
    %v273 = vmax.f32 %v234, 0.0
    %v274 = vmax.f32 %v236, 0.0
    %v275 = vmax.f32 %v239, 0.0
    %v276 = vmax.f32 %v241, 0.0
    %v277 = vmax.f32 %v244, 0.0
    %v278 = vmax.f32 %v246, 0.0
    %v279 = vmax.f32 %v249, 0.0
    %v280 = vmax.f32 %v251, 0.0
    %v281 = vmax.f32 %v254, 0.0
    %v282 = vmax.f32 %v256, 0.0
    %v283 = vmax.f32 %v259, 0.0
    %v284 = vmax.f32 %v261, 0.0
    %v285 = vmax.f32 %v264, 0.0
    %v286 = vmax.f32 %v266, 0.0
    %v287 = vmax.f32 %v269, 0.0
    %v288 = vmax.f32 %v271, 0.0
    %v289 = vld [vmem:[#allocation9] sm:$0xf]
    %v290 = vld [vmem:[#allocation9 + $0x4] sm:$0xf]
    %v291 = vld [vmem:[#allocation9 + $0x8] sm:$0xf]
    %v292 = vld [vmem:[#allocation9 + $0xc] sm:$0xf]
    %v293 = vld [vmem:[#allocation9 + $0x10] sm:$0xf]
    %v294 = vld [vmem:[#allocation9 + $0x14] sm:$0xf]
    %v295 = vld [vmem:[#allocation9 + $0x18] sm:$0xf]
    %v296 = vld [vmem:[#allocation9 + $0x1c] sm:$0xf]
    %v297 = vld [vmem:[#allocation9 + $0x20] sm:$0xf]
    %v298 = vld [vmem:[#allocation9 + $0x24] sm:$0xf]
    %v299 = vld [vmem:[#allocation9 + $0x28] sm:$0xf]
    %v300 = vld [vmem:[#allocation9 + $0x2c] sm:$0xf]
    %v301 = vld [vmem:[#allocation9 + $0x30] sm:$0xf]
    %v302 = vld [vmem:[#allocation9 + $0x34] sm:$0xf]
    %v303 = vld [vmem:[#allocation9 + $0x38] sm:$0xf]
    %v304 = vld [vmem:[#allocation9 + $0x3c] sm:$0xf]
    %v305 = vld [vmem:[%s5] sm:$0x1]
    %v306 = vpack.c.bf16 %v274, %v273
    %v307 = vpack.c.bf16 %v276, %v275
    %v308 = vpack.c.bf16 %v278, %v277
    %v309 = vpack.c.bf16 %v280, %v279
    %v310 = vpack.c.bf16 %v282, %v281
    %v311 = vpack.c.bf16 %v284, %v283
    %v312 = vpack.c.bf16 %v286, %v285
    %v313 = vpack.c.bf16 %v288, %v287
    %v315 = vperm.slane %v305, 0
    %v333 = vunpack.c.l.b16 %v289
    %v334 = vunpack.c.l.b16 %v290
    %v335 = vunpack.c.l.b16 %v291
    %v336 = vunpack.c.l.b16 %v292
    %v337 = vunpack.c.l.b16 %v293
    %v338 = vunpack.c.l.b16 %v294
    %v339 = vunpack.c.l.b16 %v295
    %v340 = vunpack.c.l.b16 %v296
    %v341 = vunpack.c.l.b16 %v297
    %v342 = vunpack.c.l.b16 %v298
    %v343 = vunpack.c.l.b16 %v299
    %v344 = vunpack.c.l.b16 %v300
    %v345 = vunpack.c.l.b16 %v301
    %v346 = vunpack.c.l.b16 %v302
    %v347 = vunpack.c.l.b16 %v303
    %v348 = vunpack.c.l.b16 %v304
    %v349 = vpack.c.b16 %v334, %v333
    %v350 = vpack.c.b16 %v336, %v335
    %v351 = vpack.c.b16 %v338, %v337
    %v352 = vpack.c.b16 %v340, %v339
    %v353 = vpack.c.b16 %v342, %v341
    %v354 = vpack.c.b16 %v344, %v343
    %v355 = vpack.c.b16 %v346, %v345
    %v356 = vpack.c.b16 %v348, %v347
    %365 = vmatpush.bf16.msra.mxu0 %v356
    %366 = vmatpush.bf16.msra.mxu0 %v355
    %367 = vmatpush.bf16.msra.mxu0 %v354
    %368 = vmatpush.bf16.msra.mxu0 %v353
    %369 = vmatpush.bf16.msra.mxu0 %v352
    %370 = vmatpush.bf16.msra.mxu0 %v351
    %371 = vmatpush.bf16.msra.mxu0 %v350
    %372 = vmatpush.bf16.msra.mxu0 %v349
    %373 = vmatmul.bf16.gmra.mxu0 %v306
    %v374 = vpop.f32.mrf.mxu0
    %v375 = vadd.f32 %v315, %v374
    %v376 = vpop.f32.mrf.mxu0
    %v377 = vadd.f32 %v315, %v376
    %378 = vmatmul.bf16.gmra.mxu0 %v307
    %v379 = vpop.f32.mrf.mxu0
    %v380 = vadd.f32 %v315, %v379
    %v381 = vpop.f32.mrf.mxu0
    %v382 = vadd.f32 %v315, %v381
    %383 = vmatmul.bf16.gmra.mxu0 %v308
    %v384 = vpop.f32.mrf.mxu0
    %v385 = vadd.f32 %v315, %v384
    %v386 = vpop.f32.mrf.mxu0
    %v387 = vadd.f32 %v315, %v386
    %388 = vmatmul.bf16.gmra.mxu0 %v309
    %v389 = vpop.f32.mrf.mxu0
    %v390 = vadd.f32 %v315, %v389
    %v391 = vpop.f32.mrf.mxu0
    %v392 = vadd.f32 %v315, %v391
    %393 = vmatmul.bf16.gmra.mxu0 %v310
    %v394 = vpop.f32.mrf.mxu0
    %v395 = vadd.f32 %v315, %v394
    %v396 = vpop.f32.mrf.mxu0
    %v397 = vadd.f32 %v315, %v396
    %398 = vmatmul.bf16.gmra.mxu0 %v311
    %v399 = vpop.f32.mrf.mxu0
    %v400 = vadd.f32 %v315, %v399
    %v401 = vpop.f32.mrf.mxu0
    %v402 = vadd.f32 %v315, %v401
    %403 = vmatmul.bf16.gmra.mxu0 %v312
    %v404 = vpop.f32.mrf.mxu0
    %v405 = vadd.f32 %v315, %v404
    %v406 = vpop.f32.mrf.mxu0
    %v407 = vadd.f32 %v315, %v406
    %408 = vmatmul.bf16.gmra.mxu0 %v313
    %v409 = vpop.f32.mrf.mxu0
    %v410 = vadd.f32 %v315, %v409
    %v411 = vpop.f32.mrf.mxu0
    %v412 = vadd.f32 %v315, %v411
    %413 = vdwg.mxu0
    %v414 = vmax.f32 %v375, 0.0
    %v415 = vmax.f32 %v377, 0.0
    %v416 = vmax.f32 %v380, 0.0
    %v417 = vmax.f32 %v382, 0.0
    %v418 = vmax.f32 %v385, 0.0
    %v419 = vmax.f32 %v387, 0.0
    %v420 = vmax.f32 %v390, 0.0
    %v421 = vmax.f32 %v392, 0.0
    %v422 = vmax.f32 %v395, 0.0
    %v423 = vmax.f32 %v397, 0.0
    %v424 = vmax.f32 %v400, 0.0
    %v425 = vmax.f32 %v402, 0.0
    %v426 = vmax.f32 %v405, 0.0
    %v427 = vmax.f32 %v407, 0.0
    %v428 = vmax.f32 %v410, 0.0
    %v429 = vmax.f32 %v412, 0.0
    %v430 = vld [vmem:[#allocation10] sm:$0xf]
    %v431 = vld [vmem:[#allocation10 + $0x4] sm:$0xf]
    %v432 = vld [vmem:[#allocation10 + $0x8] sm:$0xf]
    %v433 = vld [vmem:[#allocation10 + $0xc] sm:$0xf]
    %v434 = vld [vmem:[#allocation10 + $0x10] sm:$0xf]
    %v435 = vld [vmem:[#allocation10 + $0x14] sm:$0xf]
    %v436 = vld [vmem:[#allocation10 + $0x18] sm:$0xf]
    %v437 = vld [vmem:[#allocation10 + $0x1c] sm:$0xf]
    %v438 = vld [vmem:[#allocation10 + $0x20] sm:$0xf]
    %v439 = vld [vmem:[#allocation10 + $0x24] sm:$0xf]
    %v440 = vld [vmem:[#allocation10 + $0x28] sm:$0xf]
    %v441 = vld [vmem:[#allocation10 + $0x2c] sm:$0xf]
    %v442 = vld [vmem:[#allocation10 + $0x30] sm:$0xf]
    %v443 = vld [vmem:[#allocation10 + $0x34] sm:$0xf]
    %v444 = vld [vmem:[#allocation10 + $0x38] sm:$0xf]
    %v445 = vld [vmem:[#allocation10 + $0x3c] sm:$0xf]
    %v446 = vld [vmem:[%s7] sm:$0x1]
    %v447 = vpack.c.bf16 %v415, %v414
    %v448 = vpack.c.bf16 %v417, %v416
    %v449 = vpack.c.bf16 %v419, %v418
    %v450 = vpack.c.bf16 %v421, %v420
    %v451 = vpack.c.bf16 %v423, %v422
    %v452 = vpack.c.bf16 %v425, %v424
    %v453 = vpack.c.bf16 %v427, %v426
    %v454 = vpack.c.bf16 %v429, %v428
    %v456 = vperm.slane %v446, 0
    %v474 = vunpack.c.l.b16 %v430
    %v475 = vunpack.c.l.b16 %v431
    %v476 = vunpack.c.l.b16 %v432
    %v477 = vunpack.c.l.b16 %v433
    %v478 = vunpack.c.l.b16 %v434
    %v479 = vunpack.c.l.b16 %v435
    %v480 = vunpack.c.l.b16 %v436
    %v481 = vunpack.c.l.b16 %v437
    %v482 = vunpack.c.l.b16 %v438
    %v483 = vunpack.c.l.b16 %v439
    %v484 = vunpack.c.l.b16 %v440
    %v485 = vunpack.c.l.b16 %v441
    %v486 = vunpack.c.l.b16 %v442
    %v487 = vunpack.c.l.b16 %v443
    %v488 = vunpack.c.l.b16 %v444
    %v489 = vunpack.c.l.b16 %v445
    %v490 = vpack.c.b16 %v475, %v474
    %v491 = vpack.c.b16 %v477, %v476
    %v492 = vpack.c.b16 %v479, %v478
    %v493 = vpack.c.b16 %v481, %v480
    %v494 = vpack.c.b16 %v483, %v482
    %v495 = vpack.c.b16 %v485, %v484
    %v496 = vpack.c.b16 %v487, %v486
    %v497 = vpack.c.b16 %v489, %v488
    %506 = vmatpush.bf16.msra.mxu0 %v497
    %507 = vmatpush.bf16.msra.mxu0 %v496
    %508 = vmatpush.bf16.msra.mxu0 %v495
    %509 = vmatpush.bf16.msra.mxu0 %v494
    %510 = vmatpush.bf16.msra.mxu0 %v493
    %511 = vmatpush.bf16.msra.mxu0 %v492
    %512 = vmatpush.bf16.msra.mxu0 %v491
    %513 = vmatpush.bf16.msra.mxu0 %v490
    %514 = vmatmul.bf16.gmra.mxu0 %v447
    %v515 = vpop.f32.mrf.mxu0
    %v516 = vadd.f32 %v456, %v515
    %v517 = vpop.f32.mrf.mxu0
    %v518 = vadd.f32 %v456, %v517
    %519 = vmatmul.bf16.gmra.mxu0 %v448
    %v520 = vpop.f32.mrf.mxu0
    %v521 = vadd.f32 %v456, %v520
    %v522 = vpop.f32.mrf.mxu0
    %v523 = vadd.f32 %v456, %v522
    %524 = vmatmul.bf16.gmra.mxu0 %v449
    %v525 = vpop.f32.mrf.mxu0
    %v526 = vadd.f32 %v456, %v525
    %v527 = vpop.f32.mrf.mxu0
    %v528 = vadd.f32 %v456, %v527
    %529 = vmatmul.bf16.gmra.mxu0 %v450
    %v530 = vpop.f32.mrf.mxu0
    %v531 = vadd.f32 %v456, %v530
    %v532 = vpop.f32.mrf.mxu0
    %v533 = vadd.f32 %v456, %v532
    %534 = vmatmul.bf16.gmra.mxu0 %v451
    %v535 = vpop.f32.mrf.mxu0
    %v536 = vadd.f32 %v456, %v535
    %v537 = vpop.f32.mrf.mxu0
    %v538 = vadd.f32 %v456, %v537
    %539 = vmatmul.bf16.gmra.mxu0 %v452
    %v540 = vpop.f32.mrf.mxu0
    %v541 = vadd.f32 %v456, %v540
    %v542 = vpop.f32.mrf.mxu0
    %v543 = vadd.f32 %v456, %v542
    %544 = vmatmul.bf16.gmra.mxu0 %v453
    %v545 = vpop.f32.mrf.mxu0
    %v546 = vadd.f32 %v456, %v545
    %v547 = vpop.f32.mrf.mxu0
    %v548 = vadd.f32 %v456, %v547
    %549 = vmatmul.bf16.gmra.mxu0 %v454
    %v550 = vpop.f32.mrf.mxu0
    %v551 = vadd.f32 %v456, %v550
    %v552 = vpop.f32.mrf.mxu0
    %v553 = vadd.f32 %v456, %v552
    %554 = vdwg.mxu0
    %555 = vst [vmem:[#allocation12] sm:$0xff] %v516
    %556 = vst [vmem:[#allocation12 + $0x8] sm:$0xff] %v518
    %557 = vst [vmem:[#allocation12 + $0x10] sm:$0xff] %v521
    %558 = vst [vmem:[#allocation12 + $0x18] sm:$0xff] %v523
    %559 = vst [vmem:[#allocation12 + $0x20] sm:$0xff] %v526
    %560 = vst [vmem:[#allocation12 + $0x28] sm:$0xff] %v528
    %561 = vst [vmem:[#allocation12 + $0x30] sm:$0xff] %v531
    %562 = vst [vmem:[#allocation12 + $0x38] sm:$0xff] %v533
    %563 = vst [vmem:[#allocation12 + $0x40] sm:$0xff] %v536
    %564 = vst [vmem:[#allocation12 + $0x48] sm:$0xff] %v538
    %565 = vst [vmem:[#allocation12 + $0x50] sm:$0xff] %v541
    %566 = vst [vmem:[#allocation12 + $0x58] sm:$0xff] %v543
    %567 = vst [vmem:[#allocation12 + $0x60] sm:$0xff] %v546
    %568 = vst [vmem:[#allocation12 + $0x68] sm:$0xff] %v548
    %569 = vst [vmem:[#allocation12 + $0x70] sm:$0xff] %v551
    %570 = vst [vmem:[#allocation12 + $0x78] sm:$0xff] %v553
    // Predicated region
    $region46: #{tpu_custom_call.1} parent=1 // pred_check
      _
    $region47: #{tpu_custom_call.1} parent=1 // pred_check_branch
      %572 = sbr.rel (0) target = $region49
    $region48: #{tpu_custom_call.1} parent=1 // pred_region
      %574 = vsyncadd [#allocation6], 0
      %s575 = sshll.u32 [#allocation12], 4
      %s576 = int_to_ptr.vmem [resolvable:$true] %s575
      %s577 = sshll.u32 %s8, 4
      %s578 = int_to_ptr.hbm [resolvable:$true] %s577
      %583 = dma.vmem_to_hbm [thread:$0]  %s576, 2048, %s578, [#allocation6], 128, 128, 8
    $region49: #{tpu_custom_call.1} parent=1 // pred_fallthru
      _
    // Predicated region
    $region50: #{tpu_custom_call.1} parent=1 // pred_check
      _
    $region51: #{tpu_custom_call.1} parent=1 // pred_check_branch
      %585 = sbr.rel (0) target = $region53
    $region52: #{tpu_custom_call.1} parent=1 // pred_region
      %587 = dma.done [#allocation6], 2048
    $region53: #{tpu_custom_call.1} parent=1 // pred_fallthru
      _
    %588 = vsyncpa [#allocation5], 1
    %589 = vsyncpa [#allocation8], 1
    %590 = vsyncpa [#allocation11], 1
    %591 = vsyncpa [#allocation6], 1

</llo_original>
